<compile_context>
chip_gen: v7x
topology: tpu7x:2x2x1
jax: 0.10.0
libtpu: 0.0.40
codegen_flags: <defaults>
</compile_context>

<pallas_src>
import jax
import jax.numpy as jnp
from jax.experimental import pallas as pl
from jax.experimental.pallas import tpu as pltpu


def _round_up(x, m):
    return ((x + m - 1) // m) * m


def _default_config():
    """Pick (max batch tile, vmem limit) per TPU generation."""
    try:
        kind = jax.devices()[0].device_kind.lower()
    except Exception:  # pragma: no cover - defensive
        kind = ""
    if "v7" in kind:
        # v7x: 64 MiB VMEM per TensorCore -> smaller batch tile.
        return 512, 48 * 1024 * 1024
    # v5e / v6e: 128 MiB VMEM -> big tile, raise the default scoped limit.
    return 1024, 96 * 1024 * 1024


def _last_layer_kernel(x_ref, w_ref, b_ref, o_ref):
    # logits = x @ W + b  — MXU in bf16 with f32 accumulation.
    x = x_ref[...].astype(jnp.bfloat16)          # (TB, D_in)
    logits = jnp.dot(x, w_ref[...], preferred_element_type=jnp.float32)
    logits = logits + b_ref[...]                 # (TB, D_out_p) + (1, D_out_p)

    # Numerically-stable softmax over the class (lane) axis, all in f32.
    # Padded lanes carry bias = -FLT_MAX, so they contribute exp(.) == 0.
    m = jnp.max(logits, axis=-1, keepdims=True)
    e = jnp.exp(logits - m)
    denom = jnp.sum(e, axis=-1, keepdims=True)
    probs = e * pl.reciprocal(denom, approx=True)   # EUP vrcp, ~free slot

    o_ref[...] = probs.astype(o_ref.dtype)


def last_layer_model(x, w_t, b, *, tb_max=None, vmem_limit_bytes=None):
    """softmax(x @ w_t + b, axis=-1).

    x:   (B, D_in)   float32
    w_t: (D_in, D_out) float32  (transpose of torch nn.Linear's (D_out, D_in))
    b:   (D_out,)    float32
    Returns (B, D_out) float32 probabilities.
    """
    B, D_in = x.shape
    d_in_w, D_out = w_t.shape
    assert d_in_w == D_in, "weight/input feature mismatch"

    if tb_max is None or vmem_limit_bytes is None:
        d_tb, d_vmem = _default_config()
        tb_max = tb_max if tb_max is not None else d_tb
        vmem_limit_bytes = (
            vmem_limit_bytes if vmem_limit_bytes is not None else d_vmem
        )

    # --- Lane-dense classifier head: pad D_out to a multiple of 128. -------
    D_out_p = _round_up(D_out, 128)
    if D_out_p != D_out:
        pad = D_out_p - D_out
        w_p = jnp.pad(w_t, ((0, 0), (0, pad)))
        # Pad bias with -FLT_MAX so padded logits never win the max and
        # contribute exp(.) == 0 to the softmax denominator.
        b_p = jnp.pad(b, ((0, pad),),
                      constant_values=jnp.finfo(jnp.float32).min)
    else:
        w_p, b_p = w_t, b

    w_bf = w_p.astype(jnp.bfloat16)                  # resident weight, bf16
    b2d = b_p.reshape(1, D_out_p).astype(jnp.float32)

    # --- Batch tiling: biggest tile that the generation's VMEM likes. ------
    b8 = _round_up(max(B, 1), 8)
    tb = min(tb_max, b8)
    B_p = _round_up(B, tb)
    x_p = jnp.pad(x, ((0, B_p - B), (0, 0))) if B_p != B else x

    grid = (B_p // tb,)

    out = pl.pallas_call(
        _last_layer_kernel,
        out_shape=jax.ShapeDtypeStruct((B_p, D_out_p), jnp.float32),
        grid_spec=pltpu.PrefetchScalarGridSpec(
            num_scalar_prefetch=0,
            grid=grid,
            in_specs=[
                # x: tiled over the batch axis (double-buffered by Pallas).
                pl.BlockSpec((tb, D_in), lambda i: (i, 0)),
                # W, b: constant index_map -> resident in VMEM, DMA'd once.
                pl.BlockSpec((D_in, D_out_p), lambda i: (0, 0)),
                pl.BlockSpec((1, D_out_p), lambda i: (0, 0)),
            ],
            out_specs=pl.BlockSpec((tb, D_out_p), lambda i: (i, 0)),
        ),
        compiler_params=pltpu.CompilerParams(
            # Independent batch tiles: shard across v7x's 2 TensorCores.
            dimension_semantics=("parallel",),
            vmem_limit_bytes=vmem_limit_bytes,
        ),
    )(x_p, w_bf, b2d)

    return out[:B, :D_out]


if __name__ == "__main__":
    # Small shapes consistent with the module's forward: final fc head
    # D_in -> D_out followed by softmax over classes.  D_out=100 is
    # deliberately NOT a multiple of 128 to exercise the lane-padding path
    # (the real ResNet-50 head has 1000 classes).
    B, D_in, D_out = 8, 32, 100

    key = jax.random.PRNGKey(0)
    kx, kw, kb = jax.random.split(key, 3)

    x = jax.random.normal(kx, (B, D_in), dtype=jnp.float32)
    # PyTorch nn.Linear stores weight as (D_out, D_in); we keep the transpose
    # (D_in, D_out) so the kernel computes x @ W directly.
    w_t = jax.random.normal(kw, (D_in, D_out), dtype=jnp.float32) * 0.05
    b = jax.random.normal(kb, (D_out,), dtype=jnp.float32) * 0.01

    fn = jax.jit(last_layer_model)
    out = jax.block_until_ready(fn(x, w_t, b))

    # Reference in plain JAX (f32 linear + softmax over dim=-1).  Kernel uses
    # bf16 MXU operands + approx reciprocal, so tolerances are loosened.
    ref = jax.nn.softmax(x @ w_t + b, axis=-1)
    assert out.shape == (B, D_out)
    assert bool(jnp.all(jnp.isfinite(out)))
    assert jnp.allclose(jnp.sum(out, axis=-1), 1.0, atol=5e-3)
    assert jnp.allclose(out, ref, atol=2e-3, rtol=2e-3)

    print("KERNEL_OK")
</pallas_src>

<mosaic_0001>
module attributes {stable_mosaic.version = 11 : i64} {
  func.func @_last_layer_kernel(%arg0: i32, %arg1: memref<8x32xf32, #tpu.memory_space<vmem>>, %arg2: memref<32x128xbf16, #tpu.memory_space<vmem>>, %arg3: memref<1x128xf32, #tpu.memory_space<vmem>>, %arg4: memref<8x128xf32, #tpu.memory_space<vmem>>) attributes {dimension_semantics = [#tpu.dimension_semantics<parallel>], iteration_bounds = array<i64: 1>, scalar_prefetch = 0 : i64, scratch_operands = 0 : i64, tpu.core_type = #tpu.core_type<tc>, window_params = [{transform_indices = @transform_0, window_bounds = array<i64: 8, 32>}, {pipeline_mode = #tpu.pipeline_mode<synchronous>, transform_indices = @transform_1, window_bounds = array<i64: 32, 128>}, {pipeline_mode = #tpu.pipeline_mode<synchronous>, transform_indices = @transform_2, window_bounds = array<i64: 1, 128>}, {transform_indices = @transform_3, window_bounds = array<i64: 8, 128>}]} {
    %c0 = arith.constant 0 : index
    %c0_0 = arith.constant 0 : index
    %0 = vector.load %arg1[%c0, %c0_0] : memref<8x32xf32, #tpu.memory_space<vmem>>, vector<8x32xf32>
    %1 = arith.truncf %0 : vector<8x32xf32> to vector<8x32xbf16>
    %c0_1 = arith.constant 0 : index
    %c0_2 = arith.constant 0 : index
    %2 = vector.load %arg2[%c0_1, %c0_2] : memref<32x128xbf16, #tpu.memory_space<vmem>>, vector<32x128xbf16>
    %cst = arith.constant dense<0.000000e+00> : vector<8x128xf32>
    %3 = tpu.matmul %1, %2, %cst {dimension_numbers = #tpu.dot_dimension_numbers<[1], [0], [0], [1], [0, 0, 1, 1], [], []>} : vector<8x32xbf16>, vector<32x128xbf16>, vector<8x128xf32> -> vector<8x128xf32>
    %c0_3 = arith.constant 0 : index
    %c0_4 = arith.constant 0 : index
    %4 = vector.load %arg3[%c0_3, %c0_4] : memref<1x128xf32, #tpu.memory_space<vmem>>, vector<1x128xf32>
    %5 = vector.broadcast %4 : vector<1x128xf32> to vector<8x128xf32>
    %6 = arith.addf %3, %5 : vector<8x128xf32>
    %cst_5 = arith.constant dense<0xFF800000> : vector<8xf32>
    %7 = vector.multi_reduction <maximumf>, %6, %cst_5 [1] : vector<8x128xf32> to vector<8xf32>
    %8 = vector.shape_cast %7 : vector<8xf32> to vector<8x1xf32>
    %9 = vector.broadcast %8 : vector<8x1xf32> to vector<8x128xf32>
    %10 = arith.subf %6, %9 : vector<8x128xf32>
    %11 = math.exp %10 : vector<8x128xf32>
    %cst_6 = arith.constant dense<0.000000e+00> : vector<8xf32>
    %12 = vector.multi_reduction <add>, %11, %cst_6 [1] : vector<8x128xf32> to vector<8xf32>
    %13 = vector.shape_cast %12 : vector<8xf32> to vector<8x1xf32>
    %14 = tpu.reciprocal %13 {approx = true} : vector<8x1xf32> -> vector<8x1xf32>
    %15 = vector.broadcast %14 : vector<8x1xf32> to vector<8x128xf32>
    %16 = arith.mulf %11, %15 : vector<8x128xf32>
    %c0_7 = arith.constant 0 : index
    %c0_8 = arith.constant 0 : index
    %17 = vector.load %arg4[%c0_7, %c0_8] : memref<8x128xf32, #tpu.memory_space<vmem>>, vector<8x128xf32>
    tpu.vector_store %arg4[%c0_7, %c0_8], %16 {strides = array<i32>} : memref<8x128xf32, #tpu.memory_space<vmem>>, vector<8x128xf32>,
    return
  }
  func.func @transform_0(%arg0: i32) -> (i32, i32) {
    %c0_i32 = arith.constant 0 : i32
    %c0_i32_0 = arith.constant 0 : i32
    return %arg0, %c0_i32 : i32, i32
  }
  func.func @transform_1(%arg0: i32) -> (i32, i32) {
    %c0_i32 = arith.constant 0 : i32
    %c0_i32_0 = arith.constant 0 : i32
    %c0_i32_1 = arith.constant 0 : i32
    return %c0_i32, %c0_i32_0 : i32, i32
  }
  func.func @transform_2(%arg0: i32) -> (i32, i32) {
    %c0_i32 = arith.constant 0 : i32
    %c0_i32_0 = arith.constant 0 : i32
    %c0_i32_1 = arith.constant 0 : i32
    return %c0_i32, %c0_i32_0 : i32, i32
  }
  func.func @transform_3(%arg0: i32) -> (i32, i32) {
    %c0_i32 = arith.constant 0 : i32
    %c0_i32_0 = arith.constant 0 : i32
    return %arg0, %c0_i32 : i32, i32
  }
}

</mosaic_0001>

<llo_original>
// kernel: last_layer_model.1
$region0: #{last_layer_model.1}
  #allocation0 [shape = 'u32[]', space=smem, size = 0x4, offset = 0x4, fixed_abs, tag = 'smem constant byte address 0x4 - core index']
  #allocation1 [shape = 'u32[144,128]{1,0:T(1,128)}', space=vmem, size = 0x12000, scoped, tag = 'internal scratch']
  %s0 = inlined_call_operand.hbm [shape: f32[8,32], index: 0, kind: input, shape index: {}]
  %s1 = inlined_call_operand.hbm [shape: bf16[32,128], index: 1, kind: input, shape index: {}]
  %s2 = inlined_call_operand.hbm [shape: f32[1,128], index: 2, kind: input, shape index: {}]
  %s3 = inlined_call_operand.hbm [shape: f32[8,128], index: 3, kind: output, shape index: {}]
  %s4 = sld [smem:[#allocation0]]
  $region34: #{last_layer_model.1} parent=0
    _
  %s6 = ssub.s32 1, %s4
  %s7 = scalar_select 0, %s6, %s4
  $region1: #{last_layer_model.1} parent=0
    #allocation2 [shape = 'u8[4096]{0}', space=vmem, size = 0x1000, scoped, tag = 'input window, operand 0, single buffered']
    #allocation3 [shape = 's32[1]{0}', space=sflag, size = 0x4, scoped, tag = 'scoped memory for last_layer_model.1']
    #allocation4 [shape = 's32[1]{0}', space=sflag, size = 0x4, scoped, tag = 'scoped memory for last_layer_model.1']
    #allocation5 [shape = 'u8[8192]{0}', space=vmem, size = 0x2000, scoped, tag = 'input window, operand 1, single buffered']
    #allocation6 [shape = 's32[1]{0}', space=sflag, size = 0x4, scoped, tag = 'scoped memory for last_layer_model.1']
    #allocation7 [shape = 'u8[512]{0}', space=vmem, size = 0x400, scoped, tag = 'input window, operand 2, single buffered']
    #allocation8 [shape = 'u8[4096]{0}', space=vmem, size = 0x1000, scoped, tag = 'output window, operand 0, single buffered']
    %8 = vsyncpa [#allocation3], 0
    %9 = vsyncpa [#allocation6], 0
    %10 = vsyncpa [#allocation4], 0
    // Predicated region
    $region2: #{last_layer_model.1} parent=1 // pred_check
      _
    $region3: #{last_layer_model.1} parent=1 // pred_check_branch
      %12 = sbr.rel (0) target = $region5
    $region4: #{last_layer_model.1} parent=1 // pred_region
      %s14 = ssub.s32 128, 128
      %15 = vsyncadd [#allocation3], %s14
      %s17 = sshll.u32 [#allocation2], 4
      %s18 = int_to_ptr.vmem [resolvable:$true] %s17
      %20 = dma.hbm_to_vmem [thread:$0]  %s0, 128, %s18, [#allocation3]
    $region5: #{last_layer_model.1} parent=1 // pred_fallthru
      _
    // Predicated region
    $region6: #{last_layer_model.1} parent=1 // pred_check
      _
    $region7: #{last_layer_model.1} parent=1 // pred_check_branch
      %22 = sbr.rel (0) target = $region9
    $region8: #{last_layer_model.1} parent=1 // pred_region
      %s24 = ssub.s32 256, 256
      %25 = vsyncadd [#allocation6], %s24
      %s26 = sshll.u32 [#allocation5], 4
      %s27 = int_to_ptr.vmem [resolvable:$true] %s26
      %32 = dma.hbm_to_vmem [thread:$0]  %s1, 256, %s27, [#allocation6], 64, 64, 4
    $region9: #{last_layer_model.1} parent=1 // pred_fallthru
      _
    // Predicated region
    $region10: #{last_layer_model.1} parent=1 // pred_check
      _
    $region11: #{last_layer_model.1} parent=1 // pred_check_branch
      %34 = sbr.rel (0) target = $region13
    $region12: #{last_layer_model.1} parent=1 // pred_region
      %s36 = ssub.s32 16, 16
      %37 = vsyncadd [#allocation6], %s36
      %s39 = sshll.u32 [#allocation7], 4
      %s40 = int_to_ptr.vmem [resolvable:$true] %s39
      %42 = dma.hbm_to_vmem [thread:$0]  %s2, 16, %s40, [#allocation6]
    $region13: #{last_layer_model.1} parent=1 // pred_fallthru
      _
    // Predicated region
    $region14: #{last_layer_model.1} parent=1 // pred_check
      _
    $region15: #{last_layer_model.1} parent=1 // pred_check_branch
      %44 = sbr.rel (0) target = $region17
    $region16: #{last_layer_model.1} parent=1 // pred_region
      %45 = dma.done [#allocation3], 128
    $region17: #{last_layer_model.1} parent=1 // pred_fallthru
      _
    // Predicated region
    $region18: #{last_layer_model.1} parent=1 // pred_check
      _
    $region19: #{last_layer_model.1} parent=1 // pred_check_branch
      %47 = sbr.rel (0) target = $region21
    $region20: #{last_layer_model.1} parent=1 // pred_region
      %48 = dma.done [#allocation6], 256
    $region21: #{last_layer_model.1} parent=1 // pred_fallthru
      _
    // Predicated region
    $region22: #{last_layer_model.1} parent=1 // pred_check
      _
    $region23: #{last_layer_model.1} parent=1 // pred_check_branch
      %50 = sbr.rel (0) target = $region25
    $region24: #{last_layer_model.1} parent=1 // pred_region
      %51 = dma.done [#allocation6], 16
    $region25: #{last_layer_model.1} parent=1 // pred_fallthru
      _
    %v53 = vld [vmem:[#allocation2] sm:$0xff]
    %v54 = vpack.c.bf16 %v53, %v53
    %v55 = vld [vmem:[#allocation5] sm:$0xf]
    %v56 = vld [vmem:[#allocation5 + $0x4] sm:$0xf]
    %v57 = vld [vmem:[#allocation5 + $0x8] sm:$0xf]
    %v58 = vld [vmem:[#allocation5 + $0xc] sm:$0xf]
    %v59 = vld [vmem:[#allocation7] sm:$0x1]
    %v61 = vlaneseq
    %v62 = vshrl.u32 %v61, 7
    %v63 = vsub.s32 0, %v62
    %v64 = vrot.slane %v59, %v63
    %v70 = vunpack.c.l.b16 %v55
    %v71 = vunpack.c.l.b16 %v56
    %v72 = vunpack.c.l.b16 %v57
    %v73 = vunpack.c.l.b16 %v58
    %v74 = vpack.c.b16 %v71, %v70
    %v75 = vpack.c.b16 %v73, %v72
    %vm78 = vcmask 261120
    %v80 = vsel %vm78, %v54, 0
    %82 = vmatprep.subr.bf16.mxu0 0
    %83 = vmatpush1.bf16.msra.mxu0 %v74
    %84 = vmatprep.subr.bf16.mxu0 0
    %85 = vmatpush1.bf16.msra.mxu0 %v75
    %86 = vmatprep.subr.bf16.mxu0 0
    %87 = vmatpush1.bf16.msra.mxu0 0
    %88 = vmatprep.subr.bf16.mxu0 0
    %89 = vmatpush1.bf16.msra.mxu0 0
    %90 = vmatprep.subr.bf16.mxu0 0
    %91 = vmatpush1.bf16.msra.mxu0 0
    %92 = vmatprep.subr.bf16.mxu0 0
    %93 = vmatpush1.bf16.msra.mxu0 0
    %94 = vmatprep.subr.bf16.mxu0 0
    %95 = vmatpush1.bf16.msra.mxu0 0
    %96 = vmatprep.subr.bf16.mxu0 0
    %97 = vmatpush1.bf16.msra.mxu0 0
    %98 = vmatprep.subr.bf16.mxu0 0
    %99 = vmatpush1.bf16.msra.mxu0 0
    %100 = vmatprep.subr.bf16.mxu0 0
    %101 = vmatpush1.bf16.msra.mxu0 0
    %102 = vmatprep.subr.bf16.mxu0 0
    %103 = vmatpush1.bf16.msra.mxu0 0
    %104 = vmatprep.subr.bf16.mxu0 0
    %105 = vmatpush1.bf16.msra.mxu0 0
    %106 = vmatprep.subr.bf16.mxu0 0
    %107 = vmatpush1.bf16.msra.mxu0 0
    %108 = vmatprep.subr.bf16.mxu0 0
    %109 = vmatpush1.bf16.msra.mxu0 0
    %110 = vmatprep.subr.bf16.mxu0 0
    %111 = vmatpush1.bf16.msra.mxu0 0
    %112 = vmatprep.subr.bf16.mxu0 0
    %113 = vmatpush1.bf16.msra.mxu0 0
    %114 = vmatprep.mubr.bf16.mxu0 0
    %115 = vmatmul.mubr.bf16.gmra.mrb[0].mxu0 %v80
    %v116 = vpop.f32.mrb[0].mxu0
    %v117 = vadd.f32 %v64, %v116
    %v118 = vpop.f32.mrb[0].mxu0
    %v119 = vpop.f32.mrb[0].mxu0
    %v120 = vpop.f32.mrb[0].mxu0
    %121 = vdwg.mxu0
    %122 = vmax.xlane.f32.xlu0 %v117
    %v123 = vpop.xlane.xlu0 %122
    %v124 = vsub.f32 %v117, %v123
    %v125 = vmul.f32 %v124, 1.442695
    %v126 = vpow.pop %v125
    %127 = vadd.xlane.f32.xlu0 %v126
    %v128 = vpop.xlane.xlu0 %127
    %v129 = vrcp.pop %v128
    %v130 = vmul.f32 %v126, %v129
    %131 = vst [vmem:[#allocation8] sm:$0xff] %v130
    // Predicated region
    $region26: #{last_layer_model.1} parent=1 // pred_check
      _
    $region27: #{last_layer_model.1} parent=1 // pred_check_branch
      %133 = sbr.rel (0) target = $region29
    $region28: #{last_layer_model.1} parent=1 // pred_region
      %s135 = ssub.s32 128, 128
      %136 = vsyncadd [#allocation4], %s135
      %s138 = sshll.u32 [#allocation8], 4
      %s139 = int_to_ptr.vmem [resolvable:$true] %s138
      %141 = dma.vmem_to_hbm [thread:$0]  %s139, 128, %s3, [#allocation4]
    $region29: #{last_layer_model.1} parent=1 // pred_fallthru
      _
    // Predicated region
    $region30: #{last_layer_model.1} parent=1 // pred_check
      _
    $region31: #{last_layer_model.1} parent=1 // pred_check_branch
      %143 = sbr.rel (0) target = $region33
    $region32: #{last_layer_model.1} parent=1 // pred_region
      %144 = dma.done [#allocation4], 128
    $region33: #{last_layer_model.1} parent=1 // pred_fallthru
      _
    %145 = vsyncpa [#allocation3], 1
    %146 = vsyncpa [#allocation6], 1
    %147 = vsyncpa [#allocation4], 1

</llo_original>
